<compile_context>
chip_gen: v7x
topology: tpu7x:2x2x1
jax: 0.10.0
libtpu: 0.0.40
codegen_flags: <defaults>
</compile_context>

<pallas_src>
import functools

import jax
import jax.numpy as jnp
import numpy as np
from jax.experimental import pallas as pl
from jax.experimental.pallas import tpu as pltpu

_MiB = 1024 * 1024


def pam_kernel(x_ref, w_ref, b_ref, gamma_ref, o_ref,
               kv_acc, ksum_acc, kv_bf16, q_buf, x_cache,
               *, C, Mp, eps, cache_x):
    p = pl.program_id(1)   # 0: accumulate KV / ksum / caches, 1: emit outputs
    n = pl.program_id(2)   # spatial tile index

    @pl.when(jnp.logical_and(p == 0, n == 0))
    def _init():
        kv_acc[...] = jnp.zeros_like(kv_acc)
        ksum_acc[...] = jnp.zeros_like(ksum_acc)

    @pl.when(p == 0)
    def _accumulate():
        xf = x_ref[0]                                            # (C, TN)
        xb = xf.astype(jnp.bfloat16)
        # One fused projection: rows [0:C]=value, [C:C+Mp]=key, [C+Mp:]=query.
        # Bias added in f32 after the f32-accumulated matmul (exactness of the
        # -1e4 padded-row trick depends on this).
        proj = jnp.dot(w_ref[...], xb,
                       preferred_element_type=jnp.float32) + b_ref[...]
        v = proj[:C, :]                                          # (C, TN) f32
        k = jax.nn.softplus(proj[C:C + Mp, :])                   # (Mp, TN) f32
        q = jax.nn.softplus(proj[C + Mp:, :])                    # (Mp, TN) f32
        # Cache softplus(Q) in bf16 (the phase-1 matmul consumes bf16 anyway)
        # and the x tile so phase 1 issues no second HBM read of x.
        q_buf[n] = q.astype(q_buf.dtype)
        if cache_x:
            x_cache[n] = xf.astype(x_cache.dtype)
        ksum_acc[...] += jnp.sum(k, axis=-1, keepdims=True)      # (Mp, 1)
        # KV[m, c] += sum_n k[m, n] * v[c, n]
        kv_acc[...] += jax.lax.dot_general(
            k.astype(jnp.bfloat16), v.astype(jnp.bfloat16),
            dimension_numbers=(((1,), (1,)), ((), ())),
            preferred_element_type=jnp.float32)                  # (Mp, C)

    @pl.when(jnp.logical_and(p == 1, n == 0))
    def _snapshot_kv():
        # One-time f32->bf16 cast of the finished KV accumulator, instead of
        # re-casting (and re-reading) it in every phase-1 step.
        kv_bf16[...] = kv_acc[...].astype(jnp.bfloat16)

    @pl.when(p == 1)
    def _emit():
        if cache_x:
            xf = x_cache[n].astype(jnp.float32)                  # (C, TN)
        else:
            xf = x_ref[0].astype(jnp.float32)
        q = q_buf[n]                                             # (Mp, TN) bf16
        # denom[n] = sum_m q[m, n] * (sum_n' k[m, n'] + eps)   (f32)
        denom = jnp.sum(q.astype(jnp.float32) * (ksum_acc[...] + eps),
                        axis=0, keepdims=True)                   # (1, TN)
        # Fold gamma into the (1, TN) norm vector: saves a full (C, TN) VPU
        # multiply per output tile.
        norm = gamma_ref[0, 0] * pl.reciprocal(denom, approx=True)
        # weight[c, n] = sum_m KV[m, c] * q[m, n]
        weight = jax.lax.dot_general(
            kv_bf16[...], q,
            dimension_numbers=(((0,), (0,)), ((), ())),
            preferred_element_type=jnp.float32)                  # (C, TN)
        o_ref[0] = (xf + weight * norm).astype(o_ref.dtype)


def _pick_config(N, C, Mp, x_itemsize, tile_n, budget):
    """Choose (TN, x-cache mode, VMEM estimate) under the VMEM budget.

    Cache modes: "native" (x dtype), "bf16", or None (phase-1 HBM re-read).
    Caching x removes a full HBM pass, so it is preferred over very large TN.
    """
    lane = 128

    def pad(a, m):
        return ((a + m - 1) // m) * m

    if N % lane == 0:
        cap = max(lane, min(tile_n, N))
        cands = sorted([d for d in range(lane, cap + 1, lane) if N % d == 0],
                       reverse=True)
    else:
        # No zero-padding of the spatial axis (padded columns would corrupt
        # ksum/KV/denom since softplus(bias) > 0): fall back to a single tile.
        cands = [N]

    def estimate(TN, xc_bytes):
        NT = max(1, N // TN)
        Cp = pad(C, lane)
        TNp = pad(TN, lane)
        io = 2 * 2 * pad(C, 8) * TNp * x_itemsize                 # in+out, 2x buf
        wb = 2 * (pad(C + 2 * Mp, 16) * Cp * 2                    # fused W (bf16)
                  + pad(C + 2 * Mp, 8) * lane * 4)                # fused b (f32)
        scratch = (Mp * Cp * 4                                    # kv_acc (f32)
                   + Mp * lane * 4                                # ksum (f32)
                   + Mp * Cp * 2                                  # kv snapshot
                   + NT * Mp * TNp * 2                            # q_buf (bf16)
                   + NT * pad(C, 8) * TNp * xc_bytes)             # x cache
        return io + wb + scratch

    min_cached_tn = min(512, cands[0])
    for xc_bytes, xc_kind in ((x_itemsize, "native"), (2, "bf16")):
        if xc_kind == "bf16" and x_itemsize <= 2:
            continue
        for TN in cands:
            if TN < min_cached_tn:
                break
            if estimate(TN, xc_bytes) <= budget:
                return TN, xc_kind, estimate(TN, xc_bytes)
    for TN in cands:
        if estimate(TN, 0) <= budget:
            return TN, None, estimate(TN, 0)
    TN = cands[-1]
    return TN, None, estimate(TN, 0)


def pam_forward(x, wq, bq, wk, bk, wv, bv, gamma, eps=1e-6, tile_n=1024):
    B, C, H, W = x.shape
    N = H * W
    M = wq.shape[0]
    # Pad the reduced-channel dim to a full bf16 sublane tile (16); padded
    # key/query rows get zero weights and a -1e4 bias -> softplus() == 0.
    Mp = max(16, ((M + 15) // 16) * 16)

    # VMEM budget sized from the physical capacity of the current generation
    # (64 MiB on v7x, 128 MiB on v5e/v6e); never request the full capacity.
    try:
        cap = int(getattr(pltpu.get_tpu_info(), "vmem_capacity_bytes", 0)) \
            or 64 * _MiB
    except Exception:
        cap = 64 * _MiB
    budget = min(int(cap * 0.7), 96 * _MiB)

    TN, xc_kind, est = _pick_config(N, C, Mp, x.dtype.itemsize, tile_n, budget)
    NT = N // TN
    cache_x = xc_kind is not None
    if cache_x:
        x_cache_dtype = x.dtype if xc_kind == "native" else jnp.bfloat16
        x_cache_shape = (NT, C, TN)
    else:
        x_cache_dtype = x.dtype
        x_cache_shape = (1, 8, 128)          # unused dummy scratch

    x_flat = x.reshape(B, C, N)

    # Fused projection weight/bias.
    neg = jnp.float32(-1e4)
    wkq = jnp.zeros((2 * Mp, C), dtype=jnp.float32)
    wkq = wkq.at[:M].set(wk.astype(jnp.float32))
    wkq = wkq.at[Mp:Mp + M].set(wq.astype(jnp.float32))
    bkq = jnp.full((2 * Mp,), neg, dtype=jnp.float32)
    bkq = bkq.at[:M].set(bk.astype(jnp.float32))
    bkq = bkq.at[Mp:Mp + M].set(bq.astype(jnp.float32))
    w_fused = jnp.concatenate([wv.astype(jnp.float32), wkq], axis=0)
    w_fused = w_fused.astype(jnp.bfloat16)                       # (C+2Mp, C)
    b_fused = jnp.concatenate([bv.astype(jnp.float32), bkq], axis=0)
    b_fused = b_fused.reshape(-1, 1)                             # (C+2Mp, 1)

    gamma2 = gamma.reshape(1, 1).astype(jnp.float32)

    kernel = functools.partial(pam_kernel, C=C, Mp=Mp, eps=eps, cache_x=cache_x)

    if cache_x:
        # Phase 1 reads the residual from the VMEM cache: keep the x block
        # parked on (b, 0, 0) so no per-tile HBM DMA is issued during emit.
        x_index_map = lambda b, p, n: (b, 0, n * (1 - p))
    else:
        x_index_map = lambda b, p, n: (b, 0, n)

    vmem_limit = int(max(32 * _MiB, min(int(cap * 0.75), est + 8 * _MiB)))

    out = pl.pallas_call(
        kernel,
        out_shape=jax.ShapeDtypeStruct((B, C, N), x.dtype),
        grid_spec=pltpu.PrefetchScalarGridSpec(
            num_scalar_prefetch=0,
            grid=(B, 2, NT),
            in_specs=[
                pl.BlockSpec((1, C, TN), x_index_map),                     # x
                pl.BlockSpec((C + 2 * Mp, C), lambda b, p, n: (0, 0)),     # W
                pl.BlockSpec((C + 2 * Mp, 1), lambda b, p, n: (0, 0)),     # b
                pl.BlockSpec(memory_space=pltpu.MemorySpace.SMEM),         # gamma
            ],
            # NOTE: phase 0 never writes the output; all its steps are parked
            # on block (b, 0, 0), which phase-1 step n=0 fills before the first
            # block change triggers writeback.  Relies on the current
            # writeback-on-block-change semantics (do not split phase/N axes
            # across cores without revisiting this).
            out_specs=pl.BlockSpec((1, C, TN), lambda b, p, n: (b, 0, n * p)),
            scratch_shapes=[
                pltpu.VMEM((Mp, C), jnp.float32),         # KV accumulator
                pltpu.VMEM((Mp, 1), jnp.float32),         # K row-sum accumulator
                pltpu.VMEM((Mp, C), jnp.bfloat16),        # KV bf16 snapshot
                pltpu.VMEM((NT, Mp, TN), jnp.bfloat16),   # cached softplus(Q)
                pltpu.VMEM(x_cache_shape, x_cache_dtype), # cached x tiles
            ],
        ),
        compiler_params=pltpu.CompilerParams(
            dimension_semantics=("parallel", "arbitrary", "arbitrary"),
            vmem_limit_bytes=vmem_limit,
        ),
    )(x_flat, w_fused, b_fused, gamma2)

    return out.reshape(B, C, H, W)


def pam_reference(x, wq, bq, wk, bk, wv, bv, gamma, eps=1e-6):
    """Pure-JAX f32 reference mirroring the PyTorch forward exactly."""
    B, C, H, W = x.shape
    N = H * W
    xf = x.reshape(B, C, N)
    Q = jax.nn.softplus(jnp.einsum('mc,bcn->bmn', wq, xf) + bq[None, :, None])
    K = jax.nn.softplus(jnp.einsum('mc,bcn->bmn', wk, xf) + bk[None, :, None])
    V = jnp.einsum('oc,bcn->bon', wv, xf) + bv[None, :, None]
    Qp = jnp.transpose(Q, (0, 2, 1))                                  # (B, N, M)
    KV = jnp.einsum('bmn,bcn->bmc', K, V)                             # (B, M, C)
    norm = 1.0 / jnp.einsum('bnm,bm->bn', Qp, jnp.sum(K, axis=-1) + eps)
    wval = jnp.einsum('bnm,bmc,bn->bcn', Qp, KV, norm)                # (B, C, N)
    return (xf + gamma[0] * wval).reshape(B, C, H, W)


if __name__ == "__main__":
    # Module config: in_places=32, scale=8 -> reduced channels M = 4.
    B, C, H, W = 2, 32, 16, 16
    scale = 8
    M = C // scale

    key = jax.random.PRNGKey(0)
    kx, kq, kbq, kk, kbk, kv, kbv = jax.random.split(key, 7)

    x = jax.random.normal(kx, (B, C, H, W), dtype=jnp.float32)
    wq = jax.random.normal(kq, (M, C), dtype=jnp.float32) * 0.1
    bq = jax.random.normal(kbq, (M,), dtype=jnp.float32) * 0.1
    wk = jax.random.normal(kk, (M, C), dtype=jnp.float32) * 0.1
    bk = jax.random.normal(kbk, (M,), dtype=jnp.float32) * 0.1
    wv = jax.random.normal(kv, (C, C), dtype=jnp.float32) * 0.1
    bv = jax.random.normal(kbv, (C,), dtype=jnp.float32) * 0.1
    # gamma is zeros(1) in the module; use a nonzero deterministic value so the
    # attention path is actually exercised.
    gamma = jnp.array([0.5], dtype=jnp.float32)

    # tile_n=128 -> 2 spatial tiles, so the two-phase accumulation, the x/Q
    # VMEM caches and the KV snapshot are all exercised.
    out = jax.block_until_ready(
        pam_forward(x, wq, bq, wk, bk, wv, bv, gamma, tile_n=128))
    ref = jax.block_until_ready(pam_reference(x, wq, bq, wk, bk, wv, bv, gamma))

    # bf16 MXU inputs + bf16 cached Q + approx reciprocal -> compare against
    # the f32 reference with a bf16-appropriate tolerance.
    np.testing.assert_allclose(np.asarray(out), np.asarray(ref),
                               rtol=2e-2, atol=2e-2)
    print("KERNEL_OK")
</pallas_src>

<mosaic_0001>
module attributes {stable_mosaic.version = 11 : i64} {
  func.func @pam_kernel(%arg0: i32, %arg1: i32, %arg2: i32, %arg3: memref<1x32x128xf32, #tpu.memory_space<vmem>>, %arg4: memref<64x32xbf16, #tpu.memory_space<vmem>>, %arg5: memref<64x1xf32, #tpu.memory_space<vmem>>, %arg6: memref<1x1xf32, #tpu.memory_space<smem>>, %arg7: memref<1x32x128xf32, #tpu.memory_space<vmem>>, %arg8: memref<16x32xf32, #tpu.memory_space<vmem>>, %arg9: memref<16x1xf32, #tpu.memory_space<vmem>>, %arg10: memref<16x32xbf16, #tpu.memory_space<vmem>>, %arg11: memref<2x16x128xbf16, #tpu.memory_space<vmem>>, %arg12: memref<2x32x128xf32, #tpu.memory_space<vmem>>) attributes {dimension_semantics = [#tpu.dimension_semantics<parallel>, #tpu.dimension_semantics<arbitrary>, #tpu.dimension_semantics<arbitrary>], iteration_bounds = array<i64: 2, 2, 2>, scalar_prefetch = 0 : i64, scratch_operands = 5 : i64, tpu.core_type = #tpu.core_type<tc>, window_params = [{transform_indices = @transform_0, window_bounds = array<i64: 1, 32, 128>}, {pipeline_mode = #tpu.pipeline_mode<synchronous>, transform_indices = @transform_1, window_bounds = array<i64: 64, 32>}, {pipeline_mode = #tpu.pipeline_mode<synchronous>, transform_indices = @transform_2, window_bounds = array<i64: 64, 1>}, {transform_indices = @transform_3, window_bounds = array<i64: 1, 1>}, {transform_indices = @transform_4, window_bounds = array<i64: 1, 32, 128>}]} {
    %c0_i32 = arith.constant 0 : i32
    %0 = arith.cmpi eq, %arg1, %c0_i32 : i32
    %c0_i32_0 = arith.constant 0 : i32
    %1 = arith.cmpi eq, %arg2, %c0_i32_0 : i32
    %2 = arith.andi %0, %1 : i1
    %3 = arith.extui %2 : i1 to i32
    %c0_i32_1 = arith.constant 0 : i32
    %4 = arith.cmpi ne, %3, %c0_i32_1 : i32
    scf.if %4 {
      %cst = arith.constant 0.000000e+00 : f32
      %16 = vector.broadcast %cst : f32 to vector<16x32xf32>
      %c0 = arith.constant 0 : index
      %c0_8 = arith.constant 0 : index
      %17 = vector.load %arg8[%c0, %c0_8] : memref<16x32xf32, #tpu.memory_space<vmem>>, vector<16x32xf32>
      tpu.vector_store %arg8[%c0, %c0_8], %16 {strides = array<i32>} : memref<16x32xf32, #tpu.memory_space<vmem>>, vector<16x32xf32>,
      %cst_9 = arith.constant 0.000000e+00 : f32
      %18 = vector.broadcast %cst_9 : f32 to vector<16x1xf32>
      %c0_10 = arith.constant 0 : index
      %c0_11 = arith.constant 0 : index
      %19 = vector.load %arg9[%c0_10, %c0_11] : memref<16x1xf32, #tpu.memory_space<vmem>>, vector<16x1xf32>
      tpu.vector_store %arg9[%c0_10, %c0_11], %18 {strides = array<i32>} : memref<16x1xf32, #tpu.memory_space<vmem>>, vector<16x1xf32>,
    } else {
    }
    %c0_i32_2 = arith.constant 0 : i32
    %5 = arith.cmpi eq, %arg1, %c0_i32_2 : i32
    %6 = arith.extui %5 : i1 to i32
    %c0_i32_3 = arith.constant 0 : i32
    %7 = arith.cmpi ne, %6, %c0_i32_3 : i32
    scf.if %7 {
      %c0 = arith.constant 0 : index
      %c0_8 = arith.constant 0 : index
      %c0_9 = arith.constant 0 : index
      %16 = vector.load %arg3[%c0, %c0_8, %c0_9] : memref<1x32x128xf32, #tpu.memory_space<vmem>>, vector<1x32x128xf32>
      %17 = vector.shape_cast %16 : vector<1x32x128xf32> to vector<32x128xf32>
      %18 = arith.truncf %17 : vector<32x128xf32> to vector<32x128xbf16>
      %c0_10 = arith.constant 0 : index
      %c0_11 = arith.constant 0 : index
      %19 = vector.load %arg4[%c0_10, %c0_11] : memref<64x32xbf16, #tpu.memory_space<vmem>>, vector<64x32xbf16>
      %cst = arith.constant dense<0.000000e+00> : vector<64x128xf32>
      %20 = tpu.matmul %19, %18, %cst {dimension_numbers = #tpu.dot_dimension_numbers<[1], [0], [0], [1], [0, 0, 1, 1], [], []>} : vector<64x32xbf16>, vector<32x128xbf16>, vector<64x128xf32> -> vector<64x128xf32>
      %c0_12 = arith.constant 0 : index
      %c0_13 = arith.constant 0 : index
      %21 = vector.load %arg5[%c0_12, %c0_13] : memref<64x1xf32, #tpu.memory_space<vmem>>, vector<64x1xf32>
      %22 = vector.broadcast %21 : vector<64x1xf32> to vector<64x128xf32>
      %23 = arith.addf %20, %22 : vector<64x128xf32>
      %24 = vector.extract_strided_slice %23 {offsets = [0, 0], sizes = [32, 128], strides = [1, 1]} : vector<64x128xf32> to vector<32x128xf32>
      %25 = vector.extract_strided_slice %23 {offsets = [32, 0], sizes = [16, 128], strides = [1, 1]} : vector<64x128xf32> to vector<16x128xf32>
      %cst_14 = arith.constant 0.000000e+00 : f32
      %26 = vector.broadcast %cst_14 : f32 to vector<16x128xf32>
      %27 = arith.maximumf %25, %26 : vector<16x128xf32>
      %28 = vector.broadcast %cst_14 : f32 to vector<16x128xf32>
      %29 = arith.subf %25, %28 : vector<16x128xf32>
      %30 = arith.cmpf one, %29, %29 : vector<16x128xf32>
      %31 = vector.broadcast %cst_14 : f32 to vector<16x128xf32>
      %32 = arith.addf %25, %31 : vector<16x128xf32>
      %33 = math.absf %29 : vector<16x128xf32>
      %cst_15 = arith.constant 0.000000e+00 : f32
      %34 = vector.broadcast %cst_15 : f32 to vector<16x128xf32>
      %35 = arith.subf %34, %33 : vector<16x128xf32>
      %36 = math.exp %35 : vector<16x128xf32>
      %37 = math.log1p %36 : vector<16x128xf32>
      %38 = arith.addf %27, %37 : vector<16x128xf32>
      %39 = arith.select %30, %32, %38 : vector<16x128xi1>, vector<16x128xf32>
      %40 = vector.extract_strided_slice %23 {offsets = [48, 0], sizes = [16, 128], strides = [1, 1]} : vector<64x128xf32> to vector<16x128xf32>
      %cst_16 = arith.constant 0.000000e+00 : f32
      %41 = vector.broadcast %cst_16 : f32 to vector<16x128xf32>
      %42 = arith.maximumf %40, %41 : vector<16x128xf32>
      %43 = vector.broadcast %cst_16 : f32 to vector<16x128xf32>
      %44 = arith.subf %40, %43 : vector<16x128xf32>
      %45 = arith.cmpf one, %44, %44 : vector<16x128xf32>
      %46 = vector.broadcast %cst_16 : f32 to vector<16x128xf32>
      %47 = arith.addf %40, %46 : vector<16x128xf32>
      %48 = math.absf %44 : vector<16x128xf32>
      %cst_17 = arith.constant 0.000000e+00 : f32
      %49 = vector.broadcast %cst_17 : f32 to vector<16x128xf32>
      %50 = arith.subf %49, %48 : vector<16x128xf32>
      %51 = math.exp %50 : vector<16x128xf32>
      %52 = math.log1p %51 : vector<16x128xf32>
      %53 = arith.addf %42, %52 : vector<16x128xf32>
      %54 = arith.select %45, %47, %53 : vector<16x128xi1>, vector<16x128xf32>
      %55 = arith.truncf %54 : vector<16x128xf32> to vector<16x128xbf16>
      %56 = arith.index_cast %arg2 : i32 to index
      %c0_18 = arith.constant 0 : index
      %c0_19 = arith.constant 0 : index
      %57 = vector.load %arg11[%56, %c0_18, %c0_19] : memref<2x16x128xbf16, #tpu.memory_space<vmem>>, vector<1x16x128xbf16>
      %58 = vector.shape_cast %57 : vector<1x16x128xbf16> to vector<16x128xbf16>
      %59 = vector.shape_cast %55 : vector<16x128xbf16> to vector<1x16x128xbf16>
      tpu.vector_store %arg11[%56, %c0_18, %c0_19], %59 {strides = array<i32>} : memref<2x16x128xbf16, #tpu.memory_space<vmem>>, vector<1x16x128xbf16>,
      %60 = arith.index_cast %arg2 : i32 to index
      %c0_20 = arith.constant 0 : index
      %c0_21 = arith.constant 0 : index
      %61 = vector.load %arg12[%60, %c0_20, %c0_21] : memref<2x32x128xf32, #tpu.memory_space<vmem>>, vector<1x32x128xf32>
      %62 = vector.shape_cast %61 : vector<1x32x128xf32> to vector<32x128xf32>
      %63 = vector.shape_cast %17 : vector<32x128xf32> to vector<1x32x128xf32>
      tpu.vector_store %arg12[%60, %c0_20, %c0_21], %63 {strides = array<i32>} : memref<2x32x128xf32, #tpu.memory_space<vmem>>, vector<1x32x128xf32>,
      %c0_22 = arith.constant 0 : index
      %c0_23 = arith.constant 0 : index
      %64 = vector.load %arg9[%c0_22, %c0_23] : memref<16x1xf32, #tpu.memory_space<vmem>>, vector<16x1xf32>
      %cst_24 = arith.constant dense<0.000000e+00> : vector<16xf32>
      %65 = vector.multi_reduction <add>, %39, %cst_24 [1] : vector<16x128xf32> to vector<16xf32>
      %66 = vector.shape_cast %65 : vector<16xf32> to vector<16x1xf32>
      %67 = arith.addf %64, %66 : vector<16x1xf32>
      %c0_25 = arith.constant 0 : index
      %c0_26 = arith.constant 0 : index
      %68 = vector.load %arg9[%c0_25, %c0_26] : memref<16x1xf32, #tpu.memory_space<vmem>>, vector<16x1xf32>
      tpu.vector_store %arg9[%c0_25, %c0_26], %67 {strides = array<i32>} : memref<16x1xf32, #tpu.memory_space<vmem>>, vector<16x1xf32>,
      %c0_27 = arith.constant 0 : index
      %c0_28 = arith.constant 0 : index
      %69 = vector.load %arg8[%c0_27, %c0_28] : memref<16x32xf32, #tpu.memory_space<vmem>>, vector<16x32xf32>
      %70 = arith.truncf %39 : vector<16x128xf32> to vector<16x128xbf16>
      %71 = arith.truncf %24 : vector<32x128xf32> to vector<32x128xbf16>
      %cst_29 = arith.constant dense<0.000000e+00> : vector<16x32xf32>
      %72 = tpu.matmul %70, %71, %cst_29 {dimension_numbers = #tpu.dot_dimension_numbers<[1], [1], [0], [0], [0, 0, 1, 0], [], []>} : vector<16x128xbf16>, vector<32x128xbf16>, vector<16x32xf32> -> vector<16x32xf32>
      %73 = arith.addf %69, %72 : vector<16x32xf32>
      %c0_30 = arith.constant 0 : index
      %c0_31 = arith.constant 0 : index
      %74 = vector.load %arg8[%c0_30, %c0_31] : memref<16x32xf32, #tpu.memory_space<vmem>>, vector<16x32xf32>
      tpu.vector_store %arg8[%c0_30, %c0_31], %73 {strides = array<i32>} : memref<16x32xf32, #tpu.memory_space<vmem>>, vector<16x32xf32>,
    } else {
    }
    %c1_i32 = arith.constant 1 : i32
    %8 = arith.cmpi eq, %arg1, %c1_i32 : i32
    %c0_i32_4 = arith.constant 0 : i32
    %9 = arith.cmpi eq, %arg2, %c0_i32_4 : i32
    %10 = arith.andi %8, %9 : i1
    %11 = arith.extui %10 : i1 to i32
    %c0_i32_5 = arith.constant 0 : i32
    %12 = arith.cmpi ne, %11, %c0_i32_5 : i32
    scf.if %12 {
      %c0 = arith.constant 0 : index
      %c0_8 = arith.constant 0 : index
      %16 = vector.load %arg8[%c0, %c0_8] : memref<16x32xf32, #tpu.memory_space<vmem>>, vector<16x32xf32>
      %17 = arith.truncf %16 : vector<16x32xf32> to vector<16x32xbf16>
      %c0_9 = arith.constant 0 : index
      %c0_10 = arith.constant 0 : index
      %18 = vector.load %arg10[%c0_9, %c0_10] : memref<16x32xbf16, #tpu.memory_space<vmem>>, vector<16x32xbf16>
      tpu.vector_store %arg10[%c0_9, %c0_10], %17 {strides = array<i32>} : memref<16x32xbf16, #tpu.memory_space<vmem>>, vector<16x32xbf16>,
    } else {
    }
    %c1_i32_6 = arith.constant 1 : i32
    %13 = arith.cmpi eq, %arg1, %c1_i32_6 : i32
    %14 = arith.extui %13 : i1 to i32
    %c0_i32_7 = arith.constant 0 : i32
    %15 = arith.cmpi ne, %14, %c0_i32_7 : i32
    scf.if %15 {
      %16 = arith.index_cast %arg2 : i32 to index
      %c0 = arith.constant 0 : index
      %c0_8 = arith.constant 0 : index
      %17 = vector.load %arg12[%16, %c0, %c0_8] : memref<2x32x128xf32, #tpu.memory_space<vmem>>, vector<1x32x128xf32>
      %18 = vector.shape_cast %17 : vector<1x32x128xf32> to vector<32x128xf32>
      %19 = arith.index_cast %arg2 : i32 to index
      %c0_9 = arith.constant 0 : index
      %c0_10 = arith.constant 0 : index
      %20 = vector.load %arg11[%19, %c0_9, %c0_10] : memref<2x16x128xbf16, #tpu.memory_space<vmem>>, vector<1x16x128xbf16>
      %21 = vector.shape_cast %20 : vector<1x16x128xbf16> to vector<16x128xbf16>
      %22 = arith.extf %21 : vector<16x128xbf16> to vector<16x128xf32>
      %c0_11 = arith.constant 0 : index
      %c0_12 = arith.constant 0 : index
      %23 = vector.load %arg9[%c0_11, %c0_12] : memref<16x1xf32, #tpu.memory_space<vmem>>, vector<16x1xf32>
      %cst = arith.constant 9.99999997E-7 : f32
      %24 = vector.broadcast %cst : f32 to vector<16x1xf32>
      %25 = arith.addf %23, %24 : vector<16x1xf32>
      %26 = vector.broadcast %25 : vector<16x1xf32> to vector<16x128xf32>
      %27 = arith.mulf %22, %26 : vector<16x128xf32>
      %cst_13 = arith.constant dense<0.000000e+00> : vector<128xf32>
      %28 = vector.multi_reduction <add>, %27, %cst_13 [0] : vector<16x128xf32> to vector<128xf32>
      %29 = vector.shape_cast %28 : vector<128xf32> to vector<1x128xf32>
      %c0_14 = arith.constant 0 : index
      %c0_15 = arith.constant 0 : index
      %30 = memref.load %arg6[%c0_14, %c0_15] : memref<1x1xf32, #tpu.memory_space<smem>>
      %31 = tpu.reciprocal %29 {approx = true} : vector<1x128xf32> -> vector<1x128xf32>
      %32 = vector.broadcast %30 : f32 to vector<1x128xf32>
      %33 = arith.mulf %32, %31 : vector<1x128xf32>
      %c0_16 = arith.constant 0 : index
      %c0_17 = arith.constant 0 : index
      %34 = vector.load %arg10[%c0_16, %c0_17] : memref<16x32xbf16, #tpu.memory_space<vmem>>, vector<16x32xbf16>
      %cst_18 = arith.constant dense<0.000000e+00> : vector<32x128xf32>
      %35 = tpu.matmul %34, %21, %cst_18 {dimension_numbers = #tpu.dot_dimension_numbers<[0], [0], [1], [1], [0, 1, 1, 1], [], []>} : vector<16x32xbf16>, vector<16x128xbf16>, vector<32x128xf32> -> vector<32x128xf32>
      %36 = vector.broadcast %33 : vector<1x128xf32> to vector<32x128xf32>
      %37 = arith.mulf %35, %36 : vector<32x128xf32>
      %38 = arith.addf %18, %37 : vector<32x128xf32>
      %c0_19 = arith.constant 0 : index
      %c0_20 = arith.constant 0 : index
      %c0_21 = arith.constant 0 : index
      %39 = vector.load %arg7[%c0_19, %c0_20, %c0_21] : memref<1x32x128xf32, #tpu.memory_space<vmem>>, vector<1x32x128xf32>
      %40 = vector.shape_cast %39 : vector<1x32x128xf32> to vector<32x128xf32>
      %41 = vector.shape_cast %38 : vector<32x128xf32> to vector<1x32x128xf32>
      tpu.vector_store %arg7[%c0_19, %c0_20, %c0_21], %41 {strides = array<i32>} : memref<1x32x128xf32, #tpu.memory_space<vmem>>, vector<1x32x128xf32>,
    } else {
    }
    return
  }
  func.func @transform_0(%arg0: i32, %arg1: i32, %arg2: i32) -> (i32, i32, i32) {
    %c1_i32 = arith.constant 1 : i32
    %0 = arith.subi %c1_i32, %arg1 : i32
    %1 = arith.muli %arg2, %0 : i32
    %c0_i32 = arith.constant 0 : i32
    %c0_i32_0 = arith.constant 0 : i32
    return %arg0, %c0_i32, %1 : i32, i32, i32
  }
  func.func @transform_1(%arg0: i32, %arg1: i32, %arg2: i32) -> (i32, i32) {
    %c0_i32 = arith.constant 0 : i32
    %c0_i32_0 = arith.constant 0 : i32
    %c0_i32_1 = arith.constant 0 : i32
    return %c0_i32, %c0_i32_0 : i32, i32
  }
  func.func @transform_2(%arg0: i32, %arg1: i32, %arg2: i32) -> (i32, i32) {
    %c0_i32 = arith.constant 0 : i32
    %c0_i32_0 = arith.constant 0 : i32
    %c0_i32_1 = arith.constant 0 : i32
    return %c0_i32, %c0_i32_0 : i32, i32
  }
  func.func @transform_3(%arg0: i32, %arg1: i32, %arg2: i32) -> (i32, i32) {
    %c0_i32 = arith.constant 0 : i32
    %c0_i32_0 = arith.constant 0 : i32
    %c0_i32_1 = arith.constant 0 : i32
    return %c0_i32, %c0_i32_0 : i32, i32
  }
  func.func @transform_4(%arg0: i32, %arg1: i32, %arg2: i32) -> (i32, i32, i32) {
    %0 = arith.muli %arg2, %arg1 : i32
    %c0_i32 = arith.constant 0 : i32
    %c0_i32_0 = arith.constant 0 : i32
    return %arg0, %c0_i32, %0 : i32, i32, i32
  }
}

</mosaic_0001>

<llo_original>
// kernel: tpu_custom_call.1
$region0: #{tpu_custom_call.1}
  #allocation0 [shape = 'u32[]', space=smem, size = 0x4, offset = 0x4, fixed_abs, tag = 'smem constant byte address 0x4 - core index']
  #allocation1 [shape = 'u32[144,128]{1,0:T(1,128)}', space=vmem, size = 0x12000, scoped, tag = 'internal scratch']
  #allocation2 [shape = 'f32[16,32]{1,0:T(8,128)}', space=vmem, size = 0x2000, scoped, tag = 'scratch operand']
  #allocation3 [shape = 'f32[16,1]{1,0:T(8,128)}', space=vmem, size = 0x2000, scoped, tag = 'scratch operand']
  #allocation4 [shape = 'bf16[16,32]{1,0:T(16,128)(2,1)}', space=vmem, size = 0x1000, scoped, tag = 'scratch operand']
  #allocation5 [shape = 'bf16[2,16,128]{2,1,0:T(16,128)(2,1)}', space=vmem, size = 0x2000, scoped, tag = 'scratch operand']
  #allocation6 [shape = 'f32[2,32,128]{2,1,0:T(8,128)}', space=vmem, size = 0x8000, scoped, tag = 'scratch operand']
  #allocation7 [shape = 'f32[1,1]{1,0:T(1,128)S(6)}', space=smem, size = 0x200, scoped, tag = 'scoped memory for tpu_custom_call.1']
  %s0 = inlined_call_operand.hbm [shape: f32[2,32,256], index: 0, kind: input, shape index: {}]
  %s1 = inlined_call_operand.vmem [shape: bf16[64,32], index: 1, kind: input, shape index: {}]
  %s2 = inlined_call_operand.vmem [shape: f32[64,1], index: 2, kind: input, shape index: {}]
  %s3 = inlined_call_operand.<no memory space> [shape: f32[1,1], index: 3, kind: input, shape index: {}]
  %s4 = inlined_call_operand.hbm [shape: f32[2,32,256], index: 4, kind: output, shape index: {}]
  %s5 = sld [smem:[#allocation0]]
  $region69: #{tpu_custom_call.1} parent=0
    _
  %s7 = ssub.s32 1, %s5
  %s8 = scalar_select 0, %s7, %s5
  %9 = sst [smem:[#allocation7]] %s3
  $region1: #{tpu_custom_call.1} parent=0
    #allocation8 [shape = 'u8[32768]{0}', space=vmem, size = 0x8000, scoped, tag = 'input window, operand 0']
    #allocation9 [shape = 's32[2]{0}', space=sflag, size = 0x8, scoped, tag = 'scoped memory for tpu_custom_call.1']
    #allocation10 [shape = 's32[2]{0}', space=sflag, size = 0x8, scoped, tag = 'scoped memory for tpu_custom_call.1']
    #allocation11 [shape = 'u8[32768]{0}', space=vmem, size = 0x8000, scoped, tag = 'output window, operand 0']
    %10 = vsyncpa [#allocation9], 0
    %s11 = scalar_lea.sflag [#allocation9], 1
    %12 = vsyncpa %s11, 0
    %13 = vsyncpa [#allocation10], 0
    %s14 = scalar_lea.sflag [#allocation10], 1
    %15 = vsyncpa %s14, 0
    loop: start=0, step=1, limit=10
    $region2: #{tpu_custom_call.1} parent=1 // loop_pre_header
      _
    $region3: #{tpu_custom_call.1} parent=1 // loop_header
      %s17 = sphi 0, %s21
      %p18 = scmp.ge.s32.totalorder %s17, 10
      %s24 = sphi 0, %s43
      %s25 = sphi 0, %s39
      %s26 = sphi 0, %s35
      %s27 = sphi 0, %s24
      %s28 = sphi 0, %s25
      %s29 = sphi 0, %s26
      %s30 = sphi 0, %s27
      %s31 = sphi 0, %s28
      %s32 = sphi 0, %s29
      %s52 = sphi 0, %s54
      %s55 = sphi 0, %s52
      %s56 = sphi 0, %s55
      %s72 = sphi 0, %s56
      %s76 = sphi 0, %s76
      %s78 = sphi 0, %s76
      %s79 = sphi 0, %s78
      %s93 = sphi 0, %s79
      %s97 = sphi 0, %s97
      %s99 = sphi 0, %s97
      %s100 = sphi 0, %s99
      %s114 = sphi 0, %s100
      %s118 = sphi 0, %s118
      %s120 = sphi 0, %s118
      %s121 = sphi 0, %s120
      %s135 = sphi 0, %s121
      %s145 = sphi 0, %s147
      %s148 = sphi 0, %s145
      %s149 = sphi 0, %s148
      %s165 = sphi 0, %s149
    $region4: #{tpu_custom_call.1} parent=1 // loop_header_branch
      %20 = sbr.rel (%p18) target = $region8
    $region5: #{tpu_custom_call.1} parent=1 // loop_body
      %s22 = ssub.s32 %s17, 1
      %s23 = ssub.s32 %s17, 2
      %s33 = sadd.s32 1, %s26
      %p34 = scmp.ge.s32.totalorder %s33, 2
      %s35 = scalar_select %p34, 0, %s33
      %s36 = sadd.s32 1, %s25
      %s37 = scalar_select %p34, %s36, %s25
      %p38 = scmp.ge.s32.totalorder %s37, 2
      %s39 = scalar_select %p38, 0, %s37
      %s40 = sadd.s32 1, %s24
      %s41 = scalar_select %p38, %s40, %s24
      %p42 = scmp.ge.s32.totalorder %s41, 2
      %s43 = scalar_select %p42, 0, %s41
      %s44 = ssub.s32 1, %s25
      %s45 = smul.u32 %s26, %s44
      %s46 = ssub.s32 1, %s39
      %s47 = smul.u32 %s35, %s46
      %s48 = ssub.s32 %s24, %s43
      %s49 = ssub.s32 %s45, %s47
      %s50 = sor.u32 %s48, %s49
      %p51 = scmp.eq.s32.totalorder %s50, 0
      %s53 = sadd.s32 %s52, 1
      %s54 = scalar_select %p51, %s52, %s53
      %p57 = pneg %p51
      %p58 = scmp.eq.s32.totalorder %s17, 7
      %p59 = por %p57, %p58
      %p60 = scmp.ne.s32.totalorder %s52, %s55
      %p61 = scmp.eq.s32.totalorder %s17, 0
      %p62 = por %p60, %p61
      %p63 = scmp.ne.s32.totalorder %s52, %s55
      %p64 = scmp.eq.s32.totalorder %s22, 7
      %p65 = por %p63, %p64
      %p66 = scmp.ne.s32.totalorder %s55, %s56
      %p67 = scmp.eq.s32.totalorder %s22, 0
      %p68 = por %p66, %p67
      %p69 = scmp.ne.s32.totalorder %s55, %s56
      %p70 = scmp.eq.s32.totalorder %s23, 7
      %p71 = por %p69, %p70
      %p73 = scmp.ne.s32.totalorder %s56, %s72
      %p74 = scmp.eq.s32.totalorder %s23, 0
      %p75 = por %p73, %p74
      %s77 = sadd.s32 %s76, 1
      %p80 = scmp.eq.s32.totalorder %s17, 7
      %p81 = scmp.ne.s32.totalorder %s76, %s78
      %p82 = scmp.eq.s32.totalorder %s17, 0
      %p83 = por %p81, %p82
      %p84 = scmp.ne.s32.totalorder %s76, %s78
      %p85 = scmp.eq.s32.totalorder %s22, 7
      %p86 = por %p84, %p85
      %p87 = scmp.ne.s32.totalorder %s78, %s79
      %p88 = scmp.eq.s32.totalorder %s22, 0
      %p89 = por %p87, %p88
      %p90 = scmp.ne.s32.totalorder %s78, %s79
      %p91 = scmp.eq.s32.totalorder %s23, 7
      %p92 = por %p90, %p91
      %p94 = scmp.ne.s32.totalorder %s79, %s93
      %p95 = scmp.eq.s32.totalorder %s23, 0
      %p96 = por %p94, %p95
      %s98 = sadd.s32 %s97, 1
      %p101 = scmp.eq.s32.totalorder %s17, 7
      %p102 = scmp.ne.s32.totalorder %s97, %s99
      %p103 = scmp.eq.s32.totalorder %s17, 0
      %p104 = por %p102, %p103
      %p105 = scmp.ne.s32.totalorder %s97, %s99
      %p106 = scmp.eq.s32.totalorder %s22, 7
      %p107 = por %p105, %p106
      %p108 = scmp.ne.s32.totalorder %s99, %s100
      %p109 = scmp.eq.s32.totalorder %s22, 0
      %p110 = por %p108, %p109
      %p111 = scmp.ne.s32.totalorder %s99, %s100
      %p112 = scmp.eq.s32.totalorder %s23, 7
      %p113 = por %p111, %p112
      %p115 = scmp.ne.s32.totalorder %s100, %s114
      %p116 = scmp.eq.s32.totalorder %s23, 0
      %p117 = por %p115, %p116
      %s119 = sadd.s32 %s118, 1
      %p122 = scmp.eq.s32.totalorder %s17, 7
      %p123 = scmp.ne.s32.totalorder %s118, %s120
      %p124 = scmp.eq.s32.totalorder %s17, 0
      %p125 = por %p123, %p124
      %p126 = scmp.ne.s32.totalorder %s118, %s120
      %p127 = scmp.eq.s32.totalorder %s22, 7
      %p128 = por %p126, %p127
      %p129 = scmp.ne.s32.totalorder %s120, %s121
      %p130 = scmp.eq.s32.totalorder %s22, 0
      %p131 = por %p129, %p130
      %p132 = scmp.ne.s32.totalorder %s120, %s121
      %p133 = scmp.eq.s32.totalorder %s23, 7
      %p134 = por %p132, %p133
      %p136 = scmp.ne.s32.totalorder %s121, %s135
      %p137 = scmp.eq.s32.totalorder %s23, 0
      %p138 = por %p136, %p137
      %s139 = smul.u32 %s26, %s25
      %s140 = smul.u32 %s35, %s39
      %s141 = ssub.s32 %s24, %s43
      %s142 = ssub.s32 %s139, %s140
      %s143 = sor.u32 %s141, %s142
      %p144 = scmp.eq.s32.totalorder %s143, 0
      %s146 = sadd.s32 %s145, 1
      %s147 = scalar_select %p144, %s145, %s146
      %p150 = pneg %p144
      %p151 = scmp.eq.s32.totalorder %s17, 7
      %p152 = por %p150, %p151
      %p153 = scmp.ne.s32.totalorder %s145, %s148
      %p154 = scmp.eq.s32.totalorder %s17, 0
      %p155 = por %p153, %p154
      %p156 = scmp.ne.s32.totalorder %s145, %s148
      %p157 = scmp.eq.s32.totalorder %s22, 7
      %p158 = por %p156, %p157
      %p159 = scmp.ne.s32.totalorder %s148, %s149
      %p160 = scmp.eq.s32.totalorder %s22, 0
      %p161 = por %p159, %p160
      %p162 = scmp.ne.s32.totalorder %s148, %s149
      %p163 = scmp.eq.s32.totalorder %s23, 7
      %p164 = por %p162, %p163
      %p166 = scmp.ne.s32.totalorder %s149, %s165
      %p167 = scmp.eq.s32.totalorder %s23, 0
      %p168 = por %p166, %p167
      %p169 = scmp.le.s32.totalorder 1, %s17
      %p170 = scmp.lt.s32.totalorder %s17, 9
      %p171 = pnand %p169, %p170
      %p172 = pneg %p171
      // Predicated region
      $region9: #{tpu_custom_call.1} parent=5 // pred_check
        _
      $region10: #{tpu_custom_call.1} parent=5 // pred_check_branch
        %174 = sbr.rel (%p171) target = $region12
      $region11: #{tpu_custom_call.1} parent=5 // pred_region
        %s175 = ssub.s32 %s17, 1
        // Predicated region
        $region13: #{tpu_custom_call.1} parent=11 // pred_check
          %p176 = pneg %p89
        $region14: #{tpu_custom_call.1} parent=11 // pred_check_branch
          %178 = sbr.rel (%p176) target = $region16
        $region15: #{tpu_custom_call.1} parent=11 // pred_region
          _
        $region16: #{tpu_custom_call.1} parent=11 // pred_fallthru
          _
        // Predicated region
        $region17: #{tpu_custom_call.1} parent=11 // pred_check
          %p179 = pneg %p110
        $region18: #{tpu_custom_call.1} parent=11 // pred_check_branch
          %181 = sbr.rel (%p179) target = $region20
        $region19: #{tpu_custom_call.1} parent=11 // pred_region
          _
        $region20: #{tpu_custom_call.1} parent=11 // pred_fallthru
          _
        // Predicated region
        $region21: #{tpu_custom_call.1} parent=11 // pred_check
          %p182 = pneg %p131
        $region22: #{tpu_custom_call.1} parent=11 // pred_check_branch
          %184 = sbr.rel (%p182) target = $region24
        $region23: #{tpu_custom_call.1} parent=11 // pred_region
          _
        $region24: #{tpu_custom_call.1} parent=11 // pred_fallthru
          _
      $region12: #{tpu_custom_call.1} parent=5 // pred_fallthru
        _
      %p185 = scmp.lt.s32.totalorder %s17, 8
      // Predicated region
      $region25: #{tpu_custom_call.1} parent=5 // pred_check
        %p186 = pneg %p185
      $region26: #{tpu_custom_call.1} parent=5 // pred_check_branch
        %188 = sbr.rel (%p186) target = $region28
      $region27: #{tpu_custom_call.1} parent=5 // pred_region
        // Predicated region
        $region29: #{tpu_custom_call.1} parent=27 // pred_check
          %p189 = pneg %p62
        $region30: #{tpu_custom_call.1} parent=27 // pred_check_branch
          %191 = sbr.rel (%p189) target = $region32
        $region31: #{tpu_custom_call.1} parent=27 // pred_region
          %s192 = sand.u32 %s52, 1
          %s193 = scalar_lea.sflag [#allocation9], %s192
          %s194 = sand.u32 %s52, 1
          %s195 = smul.addr %s194, 32
          %s196 = scalar_lea.vmem [#allocation8], %s195
          %s197 = ssub.s32 1, %s25
          %s198 = smul.u32 %s26, %s197
          %s200 = ssub.s32 512, 512
          %201 = vsyncadd %s193, %s200
          %s202 = smul.addr %s24, 8
          %s203 = sadd.s32 %s198, %s202
          %s204 = smul.addr %s203, 128
          %s205 = scalar_lea.hbm %s0, %s204
          %s206 = sshll.u32 %s196, 4
          %s207 = int_to_ptr.vmem [resolvable:$true] %s206
          %212 = dma.hbm_to_vmem [thread:$0]  %s205, 512, %s207, %s193, 256, 128, 8
        $region32: #{tpu_custom_call.1} parent=27 // pred_fallthru
          _
      $region28: #{tpu_custom_call.1} parent=5 // pred_fallthru
        _
      %p213 = scmp.le.s32.totalorder 1, %s17
      %p214 = scmp.lt.s32.totalorder %s17, 9
      %p215 = pnand %p213, %p214
      %p216 = pneg %p215
      // Predicated region
      $region33: #{tpu_custom_call.1} parent=5 // pred_check
        _
      $region34: #{tpu_custom_call.1} parent=5 // pred_check_branch
        %218 = sbr.rel (%p215) target = $region36
      $region35: #{tpu_custom_call.1} parent=5 // pred_region
        %s219 = ssub.s32 %s17, 1
        %s220 = sand.u32 %s55, 1
        %s221 = scalar_lea.sflag [#allocation9], %s220
        %s222 = sand.u32 %s55, 1
        %s223 = smul.addr %s222, 32
        %s224 = scalar_lea.vmem [#allocation8], %s223
        // Predicated region
        $region37: #{tpu_custom_call.1} parent=35 // pred_check
          %p225 = pneg %p68
        $region38: #{tpu_custom_call.1} parent=35 // pred_check_branch
          %227 = sbr.rel (%p225) target = $region40
        $region39: #{tpu_custom_call.1} parent=35 // pred_region
          %228 = dma.done %s221, 512
        $region40: #{tpu_custom_call.1} parent=35 // pred_fallthru
          _
        %s229 = sand.u32 %s55, 1
        %s230 = scalar_lea.sflag [#allocation9], %s229
        %s231 = sand.u32 %s55, 1
        %s232 = smul.addr %s231, 32
        %s233 = scalar_lea.vmem [#allocation8], %s232
        %p234 = pneg %p68
        %p235 = pneg %p65
        %p236 = pneg %p89
        %p237 = pneg %p86
        %p238 = pneg %p110
        %p239 = pneg %p107
        %p240 = pneg %p131
        %p241 = pneg %p128
        %p242 = pneg %p161
        %p243 = pneg %p158
        %s244 = sand.u32 %s148, 1
        %s245 = scalar_lea.sflag [#allocation10], %s244
        %s246 = sand.u32 %s148, 1
        %s247 = smul.addr %s246, 32
        %s248 = scalar_lea.vmem [#allocation11], %s247
        %s249 = ssub.s32 1, %s28
        %s250 = smul.u32 %s29, %s249
        %s251 = smul.u32 %s29, %s28
        %p253 = scmp.eq.s32.totalorder %s28, 0
        %p254 = scmp.eq.s32.totalorder %s29, 0
        %p255 = pnand %p253, %p254
        %p256 = pneg %p255
        // Predicated region
        $region41: #{tpu_custom_call.1} parent=35 // pred_check
          _
        $region42: #{tpu_custom_call.1} parent=35 // pred_check_branch
          %258 = sbr.rel (%p255) target = $region44
        $region43: #{tpu_custom_call.1} parent=35 // pred_region
          %vm259 = vcmask 261120
          %260 = vst.msk [vmem:[#allocation2] sm:$0xff] %vm259, 0.0
          %261 = vst.msk [vmem:[#allocation2 + $0x8] sm:$0xff] %vm259, 0.0
          %vm262 = vcmask 7168
          %263 = vst.msk [vmem:[#allocation3] sm:$0xff] %vm262, 0.0
          %264 = vst.msk [vmem:[#allocation3 + $0x8] sm:$0xff] %vm262, 0.0
        $region44: #{tpu_custom_call.1} parent=35 // pred_fallthru
          _
        // Predicated region
        $region45: #{tpu_custom_call.1} parent=35 // pred_check
          %p265 = pneg %p253
        $region46: #{tpu_custom_call.1} parent=35 // pred_check_branch
          %267 = sbr.rel (%p265) target = $region48
        $region47: #{tpu_custom_call.1} parent=35 // pred_region
          %v268 = vld [vmem:[%s224] sm:$0xff]
          %v269 = vld [vmem:[%s224 + $0x8] sm:$0xff]
          %v270 = vld [vmem:[%s224 + $0x10] sm:$0xff]
          %v271 = vld [vmem:[%s224 + $0x18] sm:$0xff]
          %v272 = vpack.c.bf16 %v269, %v268
          %v273 = vpack.c.bf16 %v271, %v270
          %v274 = vld [vmem:[%s1] sm:$0xf]
          %v275 = vld [vmem:[%s1 + $0x4] sm:$0xf]
          %v276 = vld [vmem:[%s1 + $0x8] sm:$0xf]
          %v277 = vld [vmem:[%s1 + $0xc] sm:$0xf]
          %v278 = vld [vmem:[%s1 + $0x10] sm:$0xf]
          %v279 = vld [vmem:[%s1 + $0x14] sm:$0xf]
          %v280 = vld [vmem:[%s1 + $0x18] sm:$0xf]
          %v281 = vld [vmem:[%s1 + $0x1c] sm:$0xf]
          %v282 = vld [vmem:[%s2] sm:$0xff]
          %v283 = vld [vmem:[%s2 + $0x8] sm:$0xff]
          %v284 = vld [vmem:[%s2 + $0x10] sm:$0xff]
          %v285 = vld [vmem:[%s2 + $0x18] sm:$0xff]
          %v286 = vld [vmem:[%s2 + $0x20] sm:$0xff]
          %v287 = vld [vmem:[%s2 + $0x28] sm:$0xff]
          %v288 = vld [vmem:[%s2 + $0x30] sm:$0xff]
          %v289 = vld [vmem:[%s2 + $0x38] sm:$0xff]
          %291 = vset.pattern.permute.xlu0 0
          %292 = vperm.xlu0 %291, %v282
          %v293 = vpop.permute.xlu0 %292
          %296 = vset.pattern.permute.xlu0 0
          %297 = vperm.xlu0 %296, %v283
          %v298 = vpop.permute.xlu0 %297
          %301 = vset.pattern.permute.xlu0 0
          %302 = vperm.xlu0 %301, %v284
          %v303 = vpop.permute.xlu0 %302
          %306 = vset.pattern.permute.xlu0 0
          %307 = vperm.xlu0 %306, %v285
          %v308 = vpop.permute.xlu0 %307
          %311 = vset.pattern.permute.xlu0 0
          %312 = vperm.xlu0 %311, %v286
          %v313 = vpop.permute.xlu0 %312
          %316 = vset.pattern.permute.xlu0 0
          %317 = vperm.xlu0 %316, %v287
          %v318 = vpop.permute.xlu0 %317
          %321 = vset.pattern.permute.xlu0 0
          %322 = vperm.xlu0 %321, %v288
          %v323 = vpop.permute.xlu0 %322
          %326 = vset.pattern.permute.xlu0 0
          %327 = vperm.xlu0 %326, %v289
          %v328 = vpop.permute.xlu0 %327
          %v338 = vunpack.c.l.b16 %v274
          %v339 = vunpack.c.l.b16 %v275
          %v340 = vunpack.c.l.b16 %v276
          %v341 = vunpack.c.l.b16 %v277
          %v342 = vunpack.c.l.b16 %v278
          %v343 = vunpack.c.l.b16 %v279
          %v344 = vunpack.c.l.b16 %v280
          %v345 = vunpack.c.l.b16 %v281
          %v346 = vpack.c.b16 %v339, %v338
          %v347 = vpack.c.b16 %v341, %v340
          %v348 = vpack.c.b16 %v343, %v342
          %v349 = vpack.c.b16 %v345, %v344
          %vm350 = vcmask 261120
          %v352 = vsel %vm350, %v346, 0
          %v355 = vsel %vm350, %v347, 0
          %v358 = vsel %vm350, %v348, 0
          %v361 = vsel %vm350, %v349, 0
          %363 = vmatprep.subr.bf16.mxu0 0
          %364 = vmatpush1.bf16.msra.mxu0 %v272
          %365 = vmatprep.subr.bf16.mxu0 0
          %366 = vmatpush1.bf16.msra.mxu0 %v273
          %367 = vmatprep.subr.bf16.mxu0 0
          %368 = vmatpush1.bf16.msra.mxu0 0
          %369 = vmatprep.subr.bf16.mxu0 0
          %370 = vmatpush1.bf16.msra.mxu0 0
          %371 = vmatprep.subr.bf16.mxu0 0
          %372 = vmatpush1.bf16.msra.mxu0 0
          %373 = vmatprep.subr.bf16.mxu0 0
          %374 = vmatpush1.bf16.msra.mxu0 0
          %375 = vmatprep.subr.bf16.mxu0 0
          %376 = vmatpush1.bf16.msra.mxu0 0
          %377 = vmatprep.subr.bf16.mxu0 0
          %378 = vmatpush1.bf16.msra.mxu0 0
          %379 = vmatprep.subr.bf16.mxu0 0
          %380 = vmatpush1.bf16.msra.mxu0 0
          %381 = vmatprep.subr.bf16.mxu0 0
          %382 = vmatpush1.bf16.msra.mxu0 0
          %383 = vmatprep.subr.bf16.mxu0 0
          %384 = vmatpush1.bf16.msra.mxu0 0
          %385 = vmatprep.subr.bf16.mxu0 0
          %386 = vmatpush1.bf16.msra.mxu0 0
          %387 = vmatprep.subr.bf16.mxu0 0
          %388 = vmatpush1.bf16.msra.mxu0 0
          %389 = vmatprep.subr.bf16.mxu0 0
          %390 = vmatpush1.bf16.msra.mxu0 0
          %391 = vmatprep.subr.bf16.mxu0 0
          %392 = vmatpush1.bf16.msra.mxu0 0
          %393 = vmatprep.subr.bf16.mxu0 0
          %394 = vmatpush1.bf16.msra.mxu0 0
          %395 = vmatprep.mubr.bf16.mxu0 0
          %396 = vmatmul.mubr.bf16.gmra.mrb[0].mxu0 %v352
          %v397 = vpop.f32.mrb[0].mxu0
          %v398 = vadd.f32 %v293, %v397
          %v399 = vpop.f32.mrb[0].mxu0
          %v400 = vpop.f32.mrb[0].mxu0
          %v401 = vadd.f32 %v298, %v400
          %v402 = vpop.f32.mrb[0].mxu0
          %403 = vmatprep.mubr.bf16.mxu0 0
          %404 = vmatmul.mubr.bf16.gmra.mrb[0].mxu0 %v355
          %v405 = vpop.f32.mrb[0].mxu0
          %v406 = vadd.f32 %v303, %v405
          %v407 = vpop.f32.mrb[0].mxu0
          %v408 = vpop.f32.mrb[0].mxu0
          %v409 = vadd.f32 %v308, %v408
          %v410 = vpop.f32.mrb[0].mxu0
          %411 = vmatprep.mubr.bf16.mxu0 0
          %412 = vmatmul.mubr.bf16.gmra.mrb[0].mxu0 %v358
          %v413 = vpop.f32.mrb[0].mxu0
          %v414 = vadd.f32 %v313, %v413
          %v415 = vpop.f32.mrb[0].mxu0
          %v416 = vpop.f32.mrb[0].mxu0
          %v417 = vadd.f32 %v318, %v416
          %v418 = vpop.f32.mrb[0].mxu0
          %419 = vmatprep.mubr.bf16.mxu0 0
          %420 = vmatmul.mubr.bf16.gmra.mrb[0].mxu0 %v361
          %v421 = vpop.f32.mrb[0].mxu0
          %v422 = vadd.f32 %v323, %v421
          %v423 = vpop.f32.mrb[0].mxu0
          %v424 = vpop.f32.mrb[0].mxu0
          %v425 = vadd.f32 %v328, %v424
          %v426 = vpop.f32.mrb[0].mxu0
          %427 = vdwg.mxu0
          %v428 = vmax.f32 %v414, 0.0
          %v429 = vmax.f32 %v417, 0.0
          %vm430 = vcmp.ne.f32.partialorder %v414, %v414
          %vm431 = vcmp.ne.f32.partialorder %v417, %v417
          %v432 = vadd.f32 %v414, 0.0
          %v433 = vadd.f32 %v417, 0.0
          %v434 = vand.u32 2147483647, %v414
          %v435 = vand.u32 2147483647, %v417
          %v436 = vsub.f32 0.0, %v434
          %v437 = vsub.f32 0.0, %v435
          %v438 = vmul.f32 %v436, 1.442695
          %v439 = vpow.pop %v438
          %v440 = vmul.f32 %v437, 1.442695
          %v441 = vpow.pop %v440
          %v442 = vadd.f32 %v439, 1.0
          %v443 = vlog2.pop %v442
          %v444 = vmul.f32 %v443, 0.6931472
          %v445 = vmul.f32 -0.5, %v439
          %v446 = vadd.f32 %v445, 1.0
          %v447 = vmul.f32 %v446, %v439
          %v448 = vand.u32 2147483647, %v439
          %vm449 = vcmp.lt.f32.partialorder %v448, 0.0004427343
          %v450 = vsel %vm449, %v447, %v444
          %v451 = vadd.f32 %v441, 1.0
          %v452 = vlog2.pop %v451
          %v453 = vmul.f32 %v452, 0.6931472
          %v454 = vmul.f32 -0.5, %v441
          %v455 = vadd.f32 %v454, 1.0
          %v456 = vmul.f32 %v455, %v441
          %v457 = vand.u32 2147483647, %v441
          %vm458 = vcmp.lt.f32.partialorder %v457, 0.0004427343
          %v459 = vsel %vm458, %v456, %v453
          %v460 = vadd.f32 %v428, %v450
          %v461 = vadd.f32 %v429, %v459
          %v462 = vsel %vm430, %v432, %v460
          %v463 = vsel %vm431, %v433, %v461
          %v464 = vmax.f32 %v422, 0.0
          %v465 = vmax.f32 %v425, 0.0
          %vm466 = vcmp.ne.f32.partialorder %v422, %v422
          %vm467 = vcmp.ne.f32.partialorder %v425, %v425
          %v468 = vadd.f32 %v422, 0.0
          %v469 = vadd.f32 %v425, 0.0
          %v470 = vand.u32 2147483647, %v422
          %v471 = vand.u32 2147483647, %v425
          %v472 = vsub.f32 0.0, %v470
          %v473 = vsub.f32 0.0, %v471
          %v474 = vmul.f32 %v472, 1.442695
          %v475 = vpow.pop %v474
          %v476 = vmul.f32 %v473, 1.442695
          %v477 = vpow.pop %v476
          %v478 = vadd.f32 %v475, 1.0
          %v479 = vlog2.pop %v478
          %v480 = vmul.f32 %v479, 0.6931472
          %v481 = vmul.f32 -0.5, %v475
          %v482 = vadd.f32 %v481, 1.0
          %v483 = vmul.f32 %v482, %v475
          %v484 = vand.u32 2147483647, %v475
          %vm485 = vcmp.lt.f32.partialorder %v484, 0.0004427343
          %v486 = vsel %vm485, %v483, %v480
          %v487 = vadd.f32 %v477, 1.0
          %v488 = vlog2.pop %v487
          %v489 = vmul.f32 %v488, 0.6931472
          %v490 = vmul.f32 -0.5, %v477
          %v491 = vadd.f32 %v490, 1.0
          %v492 = vmul.f32 %v491, %v477
          %v493 = vand.u32 2147483647, %v477
          %vm494 = vcmp.lt.f32.partialorder %v493, 0.0004427343
          %v495 = vsel %vm494, %v492, %v489
          %v496 = vadd.f32 %v464, %v486
          %v497 = vadd.f32 %v465, %v495
          %v498 = vsel %vm466, %v468, %v496
          %v499 = vsel %vm467, %v469, %v497
          %v500 = vpack.c.bf16 %v499, %v498
          %s501 = smul.addr %s29, 8
          %s502 = scalar_lea.vmem [#allocation5], %s501
          %503 = vst [vmem:[%s502] sm:$0xff] %v500
          %s504 = smul.u32 %s29, 32
          %s505 = scalar_lea.vmem [#allocation6], %s504
          %506 = vst [vmem:[%s505] sm:$0xff] %v268
          %507 = vst [vmem:[%s505 + $0x8] sm:$0xff] %v269
          %508 = vst [vmem:[%s505 + $0x10] sm:$0xff] %v270
          %509 = vst [vmem:[%s505 + $0x18] sm:$0xff] %v271
          %v510 = vld [vmem:[#allocation3] sm:$0xff]
          %v511 = vld [vmem:[#allocation3 + $0x8] sm:$0xff]
          %512 = vadd.xlane.f32.xlu0 %v462
          %v513 = vpop.xlane.xlu0 %512
          %514 = vadd.xlane.f32.xlu0 %v463
          %v515 = vpop.xlane.xlu0 %514
          %v516 = vadd.f32 %v510, %v513
          %v517 = vadd.f32 %v511, %v515
          %vm518 = vcmask 7168
          %519 = vst.msk [vmem:[#allocation3] sm:$0xff] %vm518, %v516
          %520 = vst.msk [vmem:[#allocation3 + $0x8] sm:$0xff] %vm518, %v517
          %v521 = vld [vmem:[#allocation2] sm:$0xff]
          %v522 = vld [vmem:[#allocation2 + $0x8] sm:$0xff]
          %v523 = vpack.c.bf16 %v463, %v462
          %v524 = vpack.c.bf16 %v401, %v398
          %v525 = vpack.c.bf16 %v409, %v406
          %526 = vmatprep.subr.bf16.mxu0 0
          %527 = vmatpush1.bf16.xpose.msra.mxu0 %v524
          %528 = vmatprep.subr.bf16.mxu0 0
          %529 = vmatpush1.bf16.xpose.msra.mxu0 %v525
          %530 = vmatprep.subr.bf16.mxu0 0
          %531 = vmatpush1.bf16.xpose.msra.mxu0 0
          %532 = vmatprep.subr.bf16.mxu0 0
          %533 = vmatpush1.bf16.xpose.msra.mxu0 0
          %534 = vmatprep.subr.bf16.mxu0 0
          %535 = vmatpush1.bf16.xpose.msra.mxu0 0
          %536 = vmatprep.subr.bf16.mxu0 0
          %537 = vmatpush1.bf16.xpose.msra.mxu0 0
          %538 = vmatprep.subr.bf16.mxu0 0
          %539 = vmatpush1.bf16.xpose.msra.mxu0 0
          %540 = vmatprep.subr.bf16.mxu0 0
          %541 = vmatpush1.bf16.xpose.msra.mxu0 0
          %542 = vmatprep.subr.bf16.mxu0 0
          %543 = vmatpush1.bf16.xpose.msra.mxu0 0
          %544 = vmatprep.subr.bf16.mxu0 0
          %545 = vmatpush1.bf16.xpose.msra.mxu0 0
          %546 = vmatprep.subr.bf16.mxu0 0
          %547 = vmatpush1.bf16.xpose.msra.mxu0 0
          %548 = vmatprep.subr.bf16.mxu0 0
          %549 = vmatpush1.bf16.xpose.msra.mxu0 0
          %550 = vmatprep.subr.bf16.mxu0 0
          %551 = vmatpush1.bf16.xpose.msra.mxu0 0
          %552 = vmatprep.subr.bf16.mxu0 0
          %553 = vmatpush1.bf16.xpose.msra.mxu0 0
          %554 = vmatprep.subr.bf16.mxu0 0
          %555 = vmatpush1.bf16.xpose.msra.mxu0 0
          %556 = vmatprep.subr.bf16.mxu0 0
          %557 = vmatpush1.bf16.xpose.msra.mxu0 0
          %558 = vmatprep.mubr.bf16.mxu0 0
          %559 = vmatmul.mubr.bf16.gmra.mrb[0].mxu0 %v523
          %v560 = vpop.f32.mrb[0].mxu0
          %v561 = vadd.f32 0.0, %v560
          %v562 = vpop.f32.mrb[0].mxu0
          %v563 = vpop.f32.mrb[0].mxu0
          %v564 = vadd.f32 0.0, %v563
          %v565 = vpop.f32.mrb[0].mxu0
          %566 = vdwg.mxu0
          %v567 = vadd.f32 %v521, %v561
          %v568 = vadd.f32 %v522, %v564
          %569 = vst.msk [vmem:[#allocation2] sm:$0xff] %vm350, %v567
          %570 = vst.msk [vmem:[#allocation2 + $0x8] sm:$0xff] %vm350, %v568
        $region48: #{tpu_custom_call.1} parent=35 // pred_fallthru
          _
        %p571 = scmp.eq.s32.totalorder %s28, 1
        %p572 = pnand %p571, %p254
        %p573 = pneg %p572
        // Predicated region
        $region49: #{tpu_custom_call.1} parent=35 // pred_check
          _
        $region50: #{tpu_custom_call.1} parent=35 // pred_check_branch
          %575 = sbr.rel (%p572) target = $region52
        $region51: #{tpu_custom_call.1} parent=35 // pred_region
          %v576 = vld [vmem:[#allocation2] sm:$0xff]
          %v577 = vld [vmem:[#allocation2 + $0x8] sm:$0xff]
          %v578 = vpack.c.bf16 %v577, %v576
          %vm579 = vcmask 261120
          %580 = vst.msk [vmem:[#allocation4] sm:$0xff] %vm579, %v578
        $region52: #{tpu_custom_call.1} parent=35 // pred_fallthru
          _
        // Predicated region
        $region53: #{tpu_custom_call.1} parent=35 // pred_check
          %p581 = pneg %p571
        $region54: #{tpu_custom_call.1} parent=35 // pred_check_branch
          %583 = sbr.rel (%p581) target = $region56
        $region55: #{tpu_custom_call.1} parent=35 // pred_region
          %s584 = smul.u32 %s29, 32
          %s585 = scalar_lea.vmem [#allocation6], %s584
          %v586 = vld [vmem:[%s585] sm:$0xff]
          %v587 = vld [vmem:[%s585 + $0x8] sm:$0xff]
          %v588 = vld [vmem:[%s585 + $0x10] sm:$0xff]
          %v589 = vld [vmem:[%s585 + $0x18] sm:$0xff]
          %s590 = smul.addr %s29, 8
          %s591 = scalar_lea.vmem [#allocation5], %s590
          %v592 = vld [vmem:[%s591] sm:$0xff]
          %v593 = vunpack.c.l.bf16 %v592
          %v594 = vunpack.c.h.bf16 %v592
          %v595 = vld [vmem:[#allocation3] sm:$0xff]
          %v596 = vld [vmem:[#allocation3 + $0x8] sm:$0xff]
          %v597 = vadd.f32 %v595, 1e-06
          %v598 = vadd.f32 %v596, 1e-06
          %600 = vset.pattern.permute.xlu0 0
          %601 = vperm.xlu0 %600, %v597
          %v602 = vpop.permute.xlu0 %601
          %605 = vset.pattern.permute.xlu0 0
          %606 = vperm.xlu0 %605, %v598
          %v607 = vpop.permute.xlu0 %606
          %v609 = vmul.f32 %v593, %v602
          %v610 = vmul.f32 %v594, %v607
          %v611 = vadd.f32 %v609, %v610
          %v612 = vrot.slane %v611, 4
          %v613 = vadd.f32 %v611, %v612
          %v614 = vrot.slane %v613, 2
          %v615 = vadd.f32 %v613, %v614
          %v616 = vrot.slane %v615, 1
          %v617 = vadd.f32 %v615, %v616
          %s618 = sld [smem:[#allocation7]]
          %v619 = vrcp.pop %v617
          %v620 = vstv %s618
          %v621 = vmul.f32 %v620, %v619
          %v622 = vld [vmem:[#allocation4] sm:$0xff]
          %623 = vxpose.xlu0.c.b16.start [1/8] %v622, 128
          %624 = vxpose.xlu0.c.b16.cont [2/8] 0, 128
          %625 = vxpose.xlu0.c.b16.cont [3/8] 0, 128
          %626 = vxpose.xlu0.c.b16.cont [4/8] 0, 128
          %627 = vxpose.xlu0.c.b16.cont [5/8] 0, 128
          %628 = vxpose.xlu0.c.b16.cont [6/8] 0, 128
          %629 = vxpose.xlu0.c.b16.cont [7/8] 0, 128
          %630 = vxpose.xlu0.c.b16.end [8/8] 0, 128
          %v631 = vpop.trf.xlu0
          %v632 = vpop.trf.xlu0
          %v633 = vpop.trf.xlu0
          %v634 = vpop.trf.xlu0
          %v635 = vpop.trf.xlu0
          %v636 = vpop.trf.xlu0
          %v637 = vpop.trf.xlu0
          %v638 = vpop.trf.xlu0
          %vm639 = vcmask 130048
          %v641 = vsel %vm639, %v631, 0
          %v644 = vsel %vm639, %v632, 0
          %646 = vmatprep.subr.bf16.mxu0 0
          %647 = vmatpush1.bf16.msra.mxu0 %v592
          %648 = vmatprep.subr.bf16.mxu0 0
          %649 = vmatpush1.bf16.msra.mxu0 0
          %650 = vmatprep.subr.bf16.mxu0 0
          %651 = vmatpush1.bf16.msra.mxu0 0
          %652 = vmatprep.subr.bf16.mxu0 0
          %653 = vmatpush1.bf16.msra.mxu0 0
          %654 = vmatprep.subr.bf16.mxu0 0
          %655 = vmatpush1.bf16.msra.mxu0 0
          %656 = vmatprep.subr.bf16.mxu0 0
          %657 = vmatpush1.bf16.msra.mxu0 0
          %658 = vmatprep.subr.bf16.mxu0 0
          %659 = vmatpush1.bf16.msra.mxu0 0
          %660 = vmatprep.subr.bf16.mxu0 0
          %661 = vmatpush1.bf16.msra.mxu0 0
          %662 = vmatprep.subr.bf16.mxu0 0
          %663 = vmatpush1.bf16.msra.mxu0 0
          %664 = vmatprep.subr.bf16.mxu0 0
          %665 = vmatpush1.bf16.msra.mxu0 0
          %666 = vmatprep.subr.bf16.mxu0 0
          %667 = vmatpush1.bf16.msra.mxu0 0
          %668 = vmatprep.subr.bf16.mxu0 0
          %669 = vmatpush1.bf16.msra.mxu0 0
          %670 = vmatprep.subr.bf16.mxu0 0
          %671 = vmatpush1.bf16.msra.mxu0 0
          %672 = vmatprep.subr.bf16.mxu0 0
          %673 = vmatpush1.bf16.msra.mxu0 0
          %674 = vmatprep.subr.bf16.mxu0 0
          %675 = vmatpush1.bf16.msra.mxu0 0
          %676 = vmatprep.subr.bf16.mxu0 0
          %677 = vmatpush1.bf16.msra.mxu0 0
          %678 = vmatprep.mubr.bf16.mxu0 0
          %679 = vmatmul.mubr.bf16.gmra.mrb[0].mxu0 %v641
          %v680 = vpop.f32.mrb[0].mxu0
          %v681 = vadd.f32 0.0, %v680
          %v682 = vpop.f32.mrb[0].mxu0
          %v683 = vpop.f32.mrb[0].mxu0
          %v684 = vadd.f32 0.0, %v683
          %v685 = vpop.f32.mrb[0].mxu0
          %686 = vmatprep.mubr.bf16.mxu0 0
          %687 = vmatmul.mubr.bf16.gmra.mrb[0].mxu0 %v644
          %v688 = vpop.f32.mrb[0].mxu0
          %v689 = vadd.f32 0.0, %v688
          %v690 = vpop.f32.mrb[0].mxu0
          %v691 = vpop.f32.mrb[0].mxu0
          %v692 = vadd.f32 0.0, %v691
          %v693 = vpop.f32.mrb[0].mxu0
          %694 = vdwg.mxu0
          %v695 = vmul.f32 %v681, %v621
          %v696 = vmul.f32 %v684, %v621
          %v697 = vmul.f32 %v689, %v621
          %v698 = vmul.f32 %v692, %v621
          %v699 = vadd.f32 %v586, %v695
          %v700 = vadd.f32 %v587, %v696
          %v701 = vadd.f32 %v588, %v697
          %v702 = vadd.f32 %v589, %v698
          %703 = vst [vmem:[%s248] sm:$0xff] %v699
          %704 = vst [vmem:[%s248 + $0x8] sm:$0xff] %v700
          %705 = vst [vmem:[%s248 + $0x10] sm:$0xff] %v701
          %706 = vst [vmem:[%s248 + $0x18] sm:$0xff] %v702
        $region56: #{tpu_custom_call.1} parent=35 // pred_fallthru
          _
        %s707 = sand.u32 %s148, 1
        %s708 = scalar_lea.sflag [#allocation10], %s707
        %s709 = sand.u32 %s148, 1
        %s710 = smul.addr %s709, 32
        %s711 = scalar_lea.vmem [#allocation11], %s710
        // Predicated region
        $region57: #{tpu_custom_call.1} parent=35 // pred_check
          %p712 = pneg %p158
        $region58: #{tpu_custom_call.1} parent=35 // pred_check_branch
          %714 = sbr.rel (%p712) target = $region60
        $region59: #{tpu_custom_call.1} parent=35 // pred_region
          %s715 = smul.u32 %s29, %s28
          %s717 = ssub.s32 512, 512
          %718 = vsyncadd %s708, %s717
          %s719 = smul.addr %s27, 8
          %s720 = sadd.s32 %s715, %s719
          %s721 = smul.addr %s720, 128
          %s722 = scalar_lea.hbm %s4, %s721
          %s723 = sshll.u32 %s711, 4
          %s724 = int_to_ptr.vmem [resolvable:$true] %s723
          %729 = dma.vmem_to_hbm [thread:$0]  %s724, 512, %s722, %s708, 128, 256, 8
        $region60: #{tpu_custom_call.1} parent=35 // pred_fallthru
          _
      $region36: #{tpu_custom_call.1} parent=5 // pred_fallthru
        _
      %p730 = scmp.le.s32.totalorder 2, %s17
      // Predicated region
      $region61: #{tpu_custom_call.1} parent=5 // pred_check
        %p731 = pneg %p730
      $region62: #{tpu_custom_call.1} parent=5 // pred_check_branch
        %733 = sbr.rel (%p731) target = $region64
      $region63: #{tpu_custom_call.1} parent=5 // pred_region
        %s734 = ssub.s32 %s17, 2
        // Predicated region
        $region65: #{tpu_custom_call.1} parent=63 // pred_check
          %p735 = pneg %p164
        $region66: #{tpu_custom_call.1} parent=63 // pred_check_branch
          %737 = sbr.rel (%p735) target = $region68
        $region67: #{tpu_custom_call.1} parent=63 // pred_region
          %s738 = sand.u32 %s149, 1
          %s739 = scalar_lea.sflag [#allocation10], %s738
          %s740 = sand.u32 %s149, 1
          %s741 = smul.addr %s740, 32
          %s742 = scalar_lea.vmem [#allocation11], %s741
          %743 = dma.done %s739, 512
        $region68: #{tpu_custom_call.1} parent=63 // pred_fallthru
          _
      $region64: #{tpu_custom_call.1} parent=5 // pred_fallthru
        _
    $region6: #{tpu_custom_call.1} parent=1 // loop_footer
      %s21 = sadd.s32 1, %s17
    $region7: #{tpu_custom_call.1} parent=1 // loop_footer_branch
      %16 = sbr.rel target = $region3
    $region8: #{tpu_custom_call.1} parent=1 // loop_exit
      _
    %744 = vsyncpa [#allocation9], 1
    %s745 = scalar_lea.sflag [#allocation9], 1
    %746 = vsyncpa %s745, 1
    %747 = vsyncpa [#allocation10], 1
    %s748 = scalar_lea.sflag [#allocation10], 1
    %749 = vsyncpa %s748, 1

</llo_original>
